<compile_context>
chip_gen: v6e
topology: v6e:2x2x1
jax: 0.10.0
libtpu: 0.0.40
codegen_flags: <defaults>
</compile_context>

<pallas_src>
import functools

import jax
import jax.numpy as jnp
from jax.experimental import pallas as pl
from jax.experimental.pallas import tpu as pltpu


def _round_up(x, m):
    return (x + m - 1) // m * m


def _mlp_kernel(x_ref, w1_ref, wp_ref, o_ref, acc_ref, *, th):
    # grid = (i: batch tiles, j: output-feature tiles, h: hidden (reduction) tiles)
    h = pl.program_id(2)

    @pl.when(h == 0)
    def _init():
        acc_ref[...] = jnp.zeros_like(acc_ref)

    x = x_ref[...]                                               # [tm, D_in_p]

    # Fused fc+gate GEMM: w1 block is [D_in_p, 2*th] = [fc_h | gate_h].
    fcgate = jnp.dot(x, w1_ref[...], preferred_element_type=jnp.float32)
    fc = fcgate[:, :th]                                          # [tm, th]
    gate = fcgate[:, th:]                                        # [tm, th]

    # SiLU in f32 (EUP sigmoid + VPU multiplies).
    hidden = fc * (gate * jax.nn.sigmoid(gate))                  # [tm, th] f32

    # Accumulate the proj GEMM over the hidden (h) reduction axis.
    acc_ref[...] += jnp.dot(hidden.astype(wp_ref.dtype), wp_ref[...],
                            preferred_element_type=jnp.float32)

    @pl.when(h == pl.num_programs(2) - 1)
    def _finalize():
        o_ref[...] = acc_ref[...].astype(o_ref.dtype)


def prepare_mlp_weights(w_fc, w_gate, w_proj, *, tn=None, th=None):
    """One-time weight preparation — run OUTSIDE the hot path.

    PyTorch layouts: w_fc/w_gate [H, D_in], w_proj [D_out, H].
    Returns (w1, wp, meta):
      w1: [D_in_p, n_h * 2 * th]  (per-h-tile interleave: block h = [fc_h | gate_h])
      wp: [H_p, D_out_p]          (proj weight, transposed to [in, out], padded)
    """
    H, D_in = w_fc.shape
    D_out, H2 = w_proj.shape
    assert H2 == H and w_gate.shape == (H, D_in)

    # 128-aligned tiles work on all generations (v5e MXU is 128-wide); for
    # production D_out >= 256 / H >= 512 these become 256/512 tiles (v6e/v7x).
    if th is None:
        th = min(_round_up(H, 128), 512)
    if tn is None:
        tn = min(_round_up(D_out, 128), 256)

    D_in_p = _round_up(D_in, 128)
    H_p = _round_up(H, th)
    D_out_p = _round_up(D_out, tn)
    n_h = H_p // th

    def pad2(w, r, c):
        return jnp.pad(w, ((0, r - w.shape[0]), (0, c - w.shape[1])))

    wfc_t = pad2(w_fc.T, D_in_p, H_p)        # [D_in_p, H_p]
    wgate_t = pad2(w_gate.T, D_in_p, H_p)    # [D_in_p, H_p]
    # Interleave per h-tile so one BlockSpec block of width 2*th = [fc_h | gate_h].
    w1 = jnp.concatenate(
        [wfc_t.reshape(D_in_p, n_h, th), wgate_t.reshape(D_in_p, n_h, th)],
        axis=2,
    ).reshape(D_in_p, n_h * 2 * th)

    wp = pad2(w_proj.T, H_p, D_out_p)        # [H_p, D_out_p]

    meta = dict(D_in=D_in, D_in_p=D_in_p, H=H, H_p=H_p,
                D_out=D_out, D_out_p=D_out_p, tn=tn, th=th)
    return w1, wp, meta


def mlp_forward(x, w1, wp, meta, *, tm=None):
    """x: [B, D_in]; w1/wp: outputs of prepare_mlp_weights."""
    B, D_in = x.shape
    assert D_in == meta["D_in"]
    D_in_p, H, H_p = meta["D_in_p"], meta["H"], meta["H_p"]
    D_out, D_out_p = meta["D_out"], meta["D_out_p"]
    tn, th = meta["tn"], meta["th"]

    if tm is None:
        tm = min(_round_up(B, 8), 256)
    B_p = _round_up(B, tm)

    # Zero-padding is numerically transparent: padded x columns / w1 rows are
    # zero (first GEMM unchanged); padded hidden columns have fc == 0 so the
    # gated activation is 0 and contributes nothing to the proj accumulation.
    x_p = jnp.pad(x, ((0, B_p - B), (0, D_in_p - D_in)))

    grid = (B_p // tm, D_out_p // tn, H_p // th)

    # VMEM budget: 2x double-buffered inputs + accumulator + 2x output tile.
    x_item = jnp.dtype(x.dtype).itemsize
    w_item = jnp.dtype(w1.dtype).itemsize
    footprint = (2 * tm * D_in_p * x_item            # x tile
                 + 2 * D_in_p * (2 * th) * w_item    # fused fc|gate tile
                 + 2 * th * tn * w_item              # proj tile
                 + tm * tn * 4                       # f32 accumulator
                 + 2 * tm * tn * x_item)             # output tile
    vmem_limit = int(min(max(int(footprint * 1.5), 16 * 1024 * 1024),
                         64 * 1024 * 1024))          # stay safe on v7x (64 MiB)

    cost = pl.CostEstimate(
        flops=2 * B * D_in * (2 * H) + 2 * B * H * D_out,
        transcendentals=B * H,
        bytes_accessed=(B * D_in * x_item
                        + (2 * H * D_in + H * D_out) * w_item
                        + B * D_out * x_item),
    )

    out_p = pl.pallas_call(
        functools.partial(_mlp_kernel, th=th),
        out_shape=jax.ShapeDtypeStruct((B_p, D_out_p), x.dtype),
        grid_spec=pltpu.PrefetchScalarGridSpec(
            num_scalar_prefetch=0,
            grid=grid,
            in_specs=[
                # x tile stays resident across j and h (index depends only on i).
                pl.BlockSpec((tm, D_in_p), lambda i, j, h: (i, 0)),
                # fused fc|gate weight block: depends only on the reduction index.
                pl.BlockSpec((D_in_p, 2 * th), lambda i, j, h: (0, h)),
                # proj weight block.
                pl.BlockSpec((th, tn), lambda i, j, h: (h, j)),
            ],
            # Lane-dense output tile (tn is a multiple of 128), resident across h.
            out_specs=pl.BlockSpec((tm, tn), lambda i, j, h: (i, j)),
            scratch_shapes=[pltpu.VMEM((tm, tn), jnp.float32)],
        ),
        compiler_params=pltpu.CompilerParams(
            dimension_semantics=("parallel", "parallel", "arbitrary"),
            vmem_limit_bytes=vmem_limit,
        ),
        cost_estimate=cost,
    )(x_p, w1, wp)

    return out_p[:B, :D_out]


if __name__ == "__main__":
    # Small shapes consistent with the module: batch=8, input_dim=32,
    # hidden_dim=64, output_dim=32 (padded to 128-lane tiles inside the wrapper).
    B, D_in, H, D_out = 8, 32, 64, 32

    key = jax.random.PRNGKey(0)
    kx, kfc, kgate, kproj = jax.random.split(key, 4)

    x = jax.random.normal(kx, (B, D_in), dtype=jnp.float32)
    # PyTorch nn.Linear weight layout: [out_features, in_features].
    w_fc = jax.random.normal(kfc, (H, D_in), dtype=jnp.float32) * 0.1
    w_gate = jax.random.normal(kgate, (H, D_in), dtype=jnp.float32) * 0.1
    w_proj = jax.random.normal(kproj, (D_out, H), dtype=jnp.float32) * 0.1

    # One-time weight prep (transpose + pad + fc/gate interleave) — hot path
    # only sees pre-laid-out weights.
    w1, wp, meta = prepare_mlp_weights(w_fc, w_gate, w_proj)
    w1, wp = jax.block_until_ready((w1, wp))

    out = mlp_forward(x, w1, wp, meta)
    out = jax.block_until_ready(out)

    # Pure-JAX reference (same semantics as the PyTorch forward).
    gate_ref = x @ w_gate.T
    ref = ((x @ w_fc.T) * (gate_ref * jax.nn.sigmoid(gate_ref))) @ w_proj.T

    assert out.shape == (B, D_out)
    max_err = float(jnp.max(jnp.abs(out - ref)))
    assert jnp.allclose(out, ref, atol=1e-3, rtol=1e-3), f"max_err={max_err}"

    print("KERNEL_OK")
</pallas_src>

<mosaic_0001>
module attributes {stable_mosaic.version = 11 : i64} {
  func.func @_mlp_kernel(%arg0: i32, %arg1: i32, %arg2: i32, %arg3: memref<8x128xf32, #tpu.memory_space<vmem>>, %arg4: memref<128x256xf32, #tpu.memory_space<vmem>>, %arg5: memref<128x128xf32, #tpu.memory_space<vmem>>, %arg6: memref<8x128xf32, #tpu.memory_space<vmem>>, %arg7: memref<8x128xf32, #tpu.memory_space<vmem>>) attributes {dimension_semantics = [#tpu.dimension_semantics<parallel>, #tpu.dimension_semantics<parallel>, #tpu.dimension_semantics<arbitrary>], iteration_bounds = array<i64: 1, 1, 1>, scalar_prefetch = 0 : i64, scratch_operands = 1 : i64, tpu.core_type = #tpu.core_type<tc>, window_params = [{transform_indices = @transform_0, window_bounds = array<i64: 8, 128>}, {transform_indices = @transform_1, window_bounds = array<i64: 128, 256>}, {transform_indices = @transform_2, window_bounds = array<i64: 128, 128>}, {transform_indices = @transform_3, window_bounds = array<i64: 8, 128>}]} {
    %c0_i32 = arith.constant 0 : i32
    %0 = arith.cmpi eq, %arg2, %c0_i32 : i32
    %1 = arith.extui %0 : i1 to i32
    %c0_i32_0 = arith.constant 0 : i32
    %2 = arith.cmpi ne, %1, %c0_i32_0 : i32
    scf.if %2 {
      %cst_14 = arith.constant 0.000000e+00 : f32
      %23 = vector.broadcast %cst_14 : f32 to vector<8x128xf32>
      %c0_15 = arith.constant 0 : index
      %c0_16 = arith.constant 0 : index
      %24 = vector.load %arg7[%c0_15, %c0_16] : memref<8x128xf32, #tpu.memory_space<vmem>>, vector<8x128xf32>
      tpu.vector_store %arg7[%c0_15, %c0_16], %23 {strides = array<i32>} : memref<8x128xf32, #tpu.memory_space<vmem>>, vector<8x128xf32>,
    } else {
    }
    %c0 = arith.constant 0 : index
    %c0_1 = arith.constant 0 : index
    %3 = vector.load %arg3[%c0, %c0_1] : memref<8x128xf32, #tpu.memory_space<vmem>>, vector<8x128xf32>
    %c0_2 = arith.constant 0 : index
    %c0_3 = arith.constant 0 : index
    %4 = vector.load %arg4[%c0_2, %c0_3] : memref<128x256xf32, #tpu.memory_space<vmem>>, vector<128x256xf32>
    %cst = arith.constant dense<0.000000e+00> : vector<8x256xf32>
    %5 = tpu.matmul %3, %4, %cst {dimension_numbers = #tpu.dot_dimension_numbers<[1], [0], [0], [1], [0, 0, 1, 1], [], []>} : vector<8x128xf32>, vector<128x256xf32>, vector<8x256xf32> -> vector<8x256xf32>
    %6 = vector.extract_strided_slice %5 {offsets = [0, 0], sizes = [8, 128], strides = [1, 1]} : vector<8x256xf32> to vector<8x128xf32>
    %7 = vector.extract_strided_slice %5 {offsets = [0, 128], sizes = [8, 128], strides = [1, 1]} : vector<8x256xf32> to vector<8x128xf32>
    %8 = arith.negf %7 : vector<8x128xf32>
    %9 = math.exp %8 : vector<8x128xf32>
    %cst_4 = arith.constant 1.000000e+00 : f32
    %10 = vector.broadcast %cst_4 : f32 to vector<8x128xf32>
    %11 = arith.addf %10, %9 : vector<8x128xf32>
    %12 = arith.divf %10, %11 : vector<8x128xf32>
    %13 = arith.mulf %7, %12 : vector<8x128xf32>
    %14 = arith.mulf %6, %13 : vector<8x128xf32>
    %c0_5 = arith.constant 0 : index
    %c0_6 = arith.constant 0 : index
    %15 = vector.load %arg7[%c0_5, %c0_6] : memref<8x128xf32, #tpu.memory_space<vmem>>, vector<8x128xf32>
    %c0_7 = arith.constant 0 : index
    %c0_8 = arith.constant 0 : index
    %16 = vector.load %arg5[%c0_7, %c0_8] : memref<128x128xf32, #tpu.memory_space<vmem>>, vector<128x128xf32>
    %cst_9 = arith.constant dense<0.000000e+00> : vector<8x128xf32>
    %17 = tpu.matmul %14, %16, %cst_9 {dimension_numbers = #tpu.dot_dimension_numbers<[1], [0], [0], [1], [0, 0, 1, 1], [], []>} : vector<8x128xf32>, vector<128x128xf32>, vector<8x128xf32> -> vector<8x128xf32>
    %18 = arith.addf %15, %17 : vector<8x128xf32>
    %c0_10 = arith.constant 0 : index
    %c0_11 = arith.constant 0 : index
    %19 = vector.load %arg7[%c0_10, %c0_11] : memref<8x128xf32, #tpu.memory_space<vmem>>, vector<8x128xf32>
    tpu.vector_store %arg7[%c0_10, %c0_11], %18 {strides = array<i32>} : memref<8x128xf32, #tpu.memory_space<vmem>>, vector<8x128xf32>,
    %c0_i32_12 = arith.constant 0 : i32
    %20 = arith.cmpi eq, %arg2, %c0_i32_12 : i32
    %21 = arith.extui %20 : i1 to i32
    %c0_i32_13 = arith.constant 0 : i32
    %22 = arith.cmpi ne, %21, %c0_i32_13 : i32
    scf.if %22 {
      %c0_14 = arith.constant 0 : index
      %c0_15 = arith.constant 0 : index
      %23 = vector.load %arg7[%c0_14, %c0_15] : memref<8x128xf32, #tpu.memory_space<vmem>>, vector<8x128xf32>
      %c0_16 = arith.constant 0 : index
      %c0_17 = arith.constant 0 : index
      %24 = vector.load %arg6[%c0_16, %c0_17] : memref<8x128xf32, #tpu.memory_space<vmem>>, vector<8x128xf32>
      tpu.vector_store %arg6[%c0_16, %c0_17], %23 {strides = array<i32>} : memref<8x128xf32, #tpu.memory_space<vmem>>, vector<8x128xf32>,
    } else {
    }
    return
  }
  func.func @transform_0(%arg0: i32, %arg1: i32, %arg2: i32) -> (i32, i32) {
    %c0_i32 = arith.constant 0 : i32
    %c0_i32_0 = arith.constant 0 : i32
    return %arg0, %c0_i32 : i32, i32
  }
  func.func @transform_1(%arg0: i32, %arg1: i32, %arg2: i32) -> (i32, i32) {
    %c0_i32 = arith.constant 0 : i32
    %c0_i32_0 = arith.constant 0 : i32
    return %c0_i32, %arg2 : i32, i32
  }
  func.func @transform_2(%arg0: i32, %arg1: i32, %arg2: i32) -> (i32, i32) {
    %c0_i32 = arith.constant 0 : i32
    return %arg2, %arg1 : i32, i32
  }
  func.func @transform_3(%arg0: i32, %arg1: i32, %arg2: i32) -> (i32, i32) {
    %c0_i32 = arith.constant 0 : i32
    return %arg0, %arg1 : i32, i32
  }
}

</mosaic_0001>

<llo_original>
// kernel: tpu_custom_call.1
$region0: #{tpu_custom_call.1}
  #allocation0 [shape = 'u32[]', space=smem, size = 0x4, offset = 0x4, fixed_abs, tag = 'smem constant byte address 0x4 - core index']
  #allocation1 [shape = 'u32[144,128]{1,0:T(1,128)}', space=vmem, size = 0x12000, scoped, tag = 'internal scratch']
  #allocation2 [shape = 'f32[8,128]{1,0:T(8,128)}', space=vmem, size = 0x1000, scoped, tag = 'scratch operand']
  %s0 = inlined_call_operand.hbm [shape: f32[8,128], index: 0, kind: input, shape index: {}]
  %s1 = inlined_call_operand.hbm [shape: f32[128,256], index: 1, kind: input, shape index: {}]
  %s2 = inlined_call_operand.hbm [shape: f32[128,128], index: 2, kind: input, shape index: {}]
  %s3 = inlined_call_operand.hbm [shape: f32[8,128], index: 3, kind: output, shape index: {}]
  %s4 = sld [smem:[#allocation0]]
  $region42: #{tpu_custom_call.1} parent=0
    _
  %s6 = ssub.s32 1, %s4
  %s7 = scalar_select 0, %s6, %s4
  $region1: #{tpu_custom_call.1} parent=0
    #allocation3 [shape = 'u8[4096]{0}', space=vmem, size = 0x1000, scoped, tag = 'input window, operand 0, single buffered']
    #allocation4 [shape = 's32[1]{0}', space=sflag, size = 0x4, scoped, tag = 'scoped memory for tpu_custom_call.1']
    #allocation5 [shape = 's32[1]{0}', space=sflag, size = 0x4, scoped, tag = 'scoped memory for tpu_custom_call.1']
    #allocation6 [shape = 'u8[131072]{0}', space=vmem, size = 0x20000, scoped, tag = 'input window, operand 1, single buffered']
    #allocation7 [shape = 's32[1]{0}', space=sflag, size = 0x4, scoped, tag = 'scoped memory for tpu_custom_call.1']
    #allocation8 [shape = 'u8[65536]{0}', space=vmem, size = 0x10000, scoped, tag = 'input window, operand 2, single buffered']
    #allocation9 [shape = 'u8[4096]{0}', space=vmem, size = 0x1000, scoped, tag = 'output window, operand 0, single buffered']
    %8 = vsyncpa [#allocation4], 0
    %9 = vsyncpa [#allocation7], 0
    %10 = vsyncpa [#allocation5], 0
    // Predicated region
    $region2: #{tpu_custom_call.1} parent=1 // pred_check
      _
    $region3: #{tpu_custom_call.1} parent=1 // pred_check_branch
      %12 = sbr.rel (0) target = $region5
    $region4: #{tpu_custom_call.1} parent=1 // pred_region
      %s14 = ssub.s32 128, 128
      %15 = vsyncadd [#allocation4], %s14
      %s17 = sshll.u32 [#allocation3], 4
      %s18 = int_to_ptr.vmem [resolvable:$true] %s17
      %20 = dma.hbm_to_vmem [thread:$0]  %s0, 128, %s18, [#allocation4]
    $region5: #{tpu_custom_call.1} parent=1 // pred_fallthru
      _
    // Predicated region
    $region6: #{tpu_custom_call.1} parent=1 // pred_check
      _
    $region7: #{tpu_custom_call.1} parent=1 // pred_check_branch
      %22 = sbr.rel (0) target = $region9
    $region8: #{tpu_custom_call.1} parent=1 // pred_region
      %s24 = ssub.s32 4096, 4096
      %25 = vsyncadd [#allocation7], %s24
      %s26 = sshll.u32 [#allocation6], 4
      %s27 = int_to_ptr.vmem [resolvable:$true] %s26
      %32 = dma.hbm_to_vmem [thread:$0]  %s1, 4096, %s27, [#allocation7], 256, 256, 16
    $region9: #{tpu_custom_call.1} parent=1 // pred_fallthru
      _
    // Predicated region
    $region10: #{tpu_custom_call.1} parent=1 // pred_check
      _
    $region11: #{tpu_custom_call.1} parent=1 // pred_check_branch
      %34 = sbr.rel (0) target = $region13
    $region12: #{tpu_custom_call.1} parent=1 // pred_region
      %s36 = ssub.s32 2048, 2048
      %37 = vsyncadd [#allocation7], %s36
      %s38 = sshll.u32 [#allocation8], 4
      %s39 = int_to_ptr.vmem [resolvable:$true] %s38
      %44 = dma.hbm_to_vmem [thread:$0]  %s2, 2048, %s39, [#allocation7], 128, 128, 8
    $region13: #{tpu_custom_call.1} parent=1 // pred_fallthru
      _
    // Predicated region
    $region14: #{tpu_custom_call.1} parent=1 // pred_check
      _
    $region15: #{tpu_custom_call.1} parent=1 // pred_check_branch
      %46 = sbr.rel (0) target = $region17
    $region16: #{tpu_custom_call.1} parent=1 // pred_region
      %47 = dma.done [#allocation4], 128
    $region17: #{tpu_custom_call.1} parent=1 // pred_fallthru
      _
    // Predicated region
    $region18: #{tpu_custom_call.1} parent=1 // pred_check
      _
    $region19: #{tpu_custom_call.1} parent=1 // pred_check_branch
      %49 = sbr.rel (0) target = $region21
    $region20: #{tpu_custom_call.1} parent=1 // pred_region
      %50 = dma.done [#allocation7], 4096
    $region21: #{tpu_custom_call.1} parent=1 // pred_fallthru
      _
    // Predicated region
    $region22: #{tpu_custom_call.1} parent=1 // pred_check
      _
    $region23: #{tpu_custom_call.1} parent=1 // pred_check_branch
      %52 = sbr.rel (0) target = $region25
    $region24: #{tpu_custom_call.1} parent=1 // pred_region
      %53 = dma.done [#allocation7], 2048
    $region25: #{tpu_custom_call.1} parent=1 // pred_fallthru
      _
    %p54 = scmp.eq.s32.totalorder 0, 0
    // Predicated region
    $region26: #{tpu_custom_call.1} parent=1 // pred_check
      %p55 = pneg %p54
    $region27: #{tpu_custom_call.1} parent=1 // pred_check_branch
      %57 = sbr.rel (%p55) target = $region29
    $region28: #{tpu_custom_call.1} parent=1 // pred_region
      %58 = vst [vmem:[#allocation2] sm:$0xff] 0.0
    $region29: #{tpu_custom_call.1} parent=1 // pred_fallthru
      _
    %v59 = vld [vmem:[#allocation3] sm:$0xff]
    %v60 = vld [vmem:[#allocation6] sm:$0xff]
    %v61 = vld [vmem:[#allocation6 + $0x8] sm:$0xff]
    %v62 = vld [vmem:[#allocation6 + $0x10] sm:$0xff]
    %v63 = vld [vmem:[#allocation6 + $0x18] sm:$0xff]
    %v64 = vld [vmem:[#allocation6 + $0x20] sm:$0xff]
    %v65 = vld [vmem:[#allocation6 + $0x28] sm:$0xff]
    %v66 = vld [vmem:[#allocation6 + $0x30] sm:$0xff]
    %v67 = vld [vmem:[#allocation6 + $0x38] sm:$0xff]
    %v68 = vld [vmem:[#allocation6 + $0x40] sm:$0xff]
    %v69 = vld [vmem:[#allocation6 + $0x48] sm:$0xff]
    %v70 = vld [vmem:[#allocation6 + $0x50] sm:$0xff]
    %v71 = vld [vmem:[#allocation6 + $0x58] sm:$0xff]
    %v72 = vld [vmem:[#allocation6 + $0x60] sm:$0xff]
    %v73 = vld [vmem:[#allocation6 + $0x68] sm:$0xff]
    %v74 = vld [vmem:[#allocation6 + $0x70] sm:$0xff]
    %v75 = vld [vmem:[#allocation6 + $0x78] sm:$0xff]
    %v76 = vld [vmem:[#allocation6 + $0x80] sm:$0xff]
    %v77 = vld [vmem:[#allocation6 + $0x88] sm:$0xff]
    %v78 = vld [vmem:[#allocation6 + $0x90] sm:$0xff]
    %v79 = vld [vmem:[#allocation6 + $0x98] sm:$0xff]
    %v80 = vld [vmem:[#allocation6 + $0xa0] sm:$0xff]
    %v81 = vld [vmem:[#allocation6 + $0xa8] sm:$0xff]
    %v82 = vld [vmem:[#allocation6 + $0xb0] sm:$0xff]
    %v83 = vld [vmem:[#allocation6 + $0xb8] sm:$0xff]
    %v84 = vld [vmem:[#allocation6 + $0xc0] sm:$0xff]
    %v85 = vld [vmem:[#allocation6 + $0xc8] sm:$0xff]
    %v86 = vld [vmem:[#allocation6 + $0xd0] sm:$0xff]
    %v87 = vld [vmem:[#allocation6 + $0xd8] sm:$0xff]
    %v88 = vld [vmem:[#allocation6 + $0xe0] sm:$0xff]
    %v89 = vld [vmem:[#allocation6 + $0xe8] sm:$0xff]
    %v90 = vld [vmem:[#allocation6 + $0xf0] sm:$0xff]
    %v91 = vld [vmem:[#allocation6 + $0xf8] sm:$0xff]
    %92 = vmatprep.subr.mxu0 %v91
    %93 = vmatpush1.msra.mxu0 %v90
    %94 = vmatprep.subr.mxu0 %v89
    %95 = vmatpush1.msra.mxu0 %v88
    %96 = vmatprep.subr.mxu0 %v87
    %97 = vmatpush1.msra.mxu0 %v86
    %98 = vmatprep.subr.mxu0 %v85
    %99 = vmatpush1.msra.mxu0 %v84
    %100 = vmatprep.subr.mxu0 %v83
    %101 = vmatpush1.msra.mxu0 %v82
    %102 = vmatprep.subr.mxu0 %v81
    %103 = vmatpush1.msra.mxu0 %v80
    %104 = vmatprep.subr.mxu0 %v79
    %105 = vmatpush1.msra.mxu0 %v78
    %106 = vmatprep.subr.mxu0 %v77
    %107 = vmatpush1.msra.mxu0 %v76
    %108 = vmatprep.subr.mxu0 %v75
    %109 = vmatpush1.msra.mxu0 %v74
    %110 = vmatprep.subr.mxu0 %v73
    %111 = vmatpush1.msra.mxu0 %v72
    %112 = vmatprep.subr.mxu0 %v71
    %113 = vmatpush1.msra.mxu0 %v70
    %114 = vmatprep.subr.mxu0 %v69
    %115 = vmatpush1.msra.mxu0 %v68
    %116 = vmatprep.subr.mxu0 %v67
    %117 = vmatpush1.msra.mxu0 %v66
    %118 = vmatprep.subr.mxu0 %v65
    %119 = vmatpush1.msra.mxu0 %v64
    %120 = vmatprep.subr.mxu0 %v63
    %121 = vmatpush1.msra.mxu0 %v62
    %122 = vmatprep.subr.mxu0 %v61
    %123 = vmatpush1.msra.mxu0 %v60
    %124 = vmatprep.subr.mxu0 0.0
    %125 = vmatpush2.msra.mxu0 0.0
    %126 = vmatprep.subr.mxu0 0.0
    %127 = vmatpush2.msra.mxu0 0.0
    %128 = vmatprep.subr.mxu0 0.0
    %129 = vmatpush2.msra.mxu0 0.0
    %130 = vmatprep.subr.mxu0 0.0
    %131 = vmatpush2.msra.mxu0 0.0
    %132 = vmatprep.subr.mxu0 0.0
    %133 = vmatpush2.msra.mxu0 0.0
    %134 = vmatprep.subr.mxu0 0.0
    %135 = vmatpush2.msra.mxu0 0.0
    %136 = vmatprep.subr.mxu0 0.0
    %137 = vmatpush2.msra.mxu0 0.0
    %138 = vmatprep.subr.mxu0 0.0
    %139 = vmatpush2.msra.mxu0 0.0
    %140 = vmatprep.subr.mxu0 0.0
    %141 = vmatpush2.msra.mxu0 0.0
    %142 = vmatprep.subr.mxu0 0.0
    %143 = vmatpush2.msra.mxu0 0.0
    %144 = vmatprep.subr.mxu0 0.0
    %145 = vmatpush2.msra.mxu0 0.0
    %146 = vmatprep.subr.mxu0 0.0
    %147 = vmatpush2.msra.mxu0 0.0
    %148 = vmatprep.subr.mxu0 0.0
    %149 = vmatpush2.msra.mxu0 0.0
    %150 = vmatprep.subr.mxu0 0.0
    %151 = vmatpush2.msra.mxu0 0.0
    %152 = vmatprep.subr.mxu0 0.0
    %153 = vmatpush2.msra.mxu0 0.0
    %154 = vmatprep.subr.mxu0 0.0
    %155 = vmatpush2.msra.mxu0 0.0
    %156 = vmatprep.mubr.f32.mxu0 0.0
    %157 = vmatmul.mubr.f32.gmra.mxu0 %v59
    %v158 = vpop.f32.mrf.mxu0
    %v159 = vadd.f32 0.0, %v158
    %v160 = vpop.f32.mrf.mxu0
    %v161 = vadd.f32 0.0, %v160
    %162 = vdwg.mxu0
    %v163 = vxor.u32 %v161, 2147483648
    %v164 = vmul.f32 %v163, 1.442695
    %v165 = vpow.pop %v164
    %v166 = vadd.f32 %v165, 1.0
    %v167 = vrcp.pop %v166
    %v168 = vmul.f32 1.0, %v167
    %v169 = vmul.f32 %v161, %v168
    %v170 = vmul.f32 %v159, %v169
    %v171 = vld [vmem:[#allocation2] sm:$0xff]
    %v172 = vld [vmem:[#allocation8] sm:$0xff]
    %v173 = vld [vmem:[#allocation8 + $0x8] sm:$0xff]
    %v174 = vld [vmem:[#allocation8 + $0x10] sm:$0xff]
    %v175 = vld [vmem:[#allocation8 + $0x18] sm:$0xff]
    %v176 = vld [vmem:[#allocation8 + $0x20] sm:$0xff]
    %v177 = vld [vmem:[#allocation8 + $0x28] sm:$0xff]
    %v178 = vld [vmem:[#allocation8 + $0x30] sm:$0xff]
    %v179 = vld [vmem:[#allocation8 + $0x38] sm:$0xff]
    %v180 = vld [vmem:[#allocation8 + $0x40] sm:$0xff]
    %v181 = vld [vmem:[#allocation8 + $0x48] sm:$0xff]
    %v182 = vld [vmem:[#allocation8 + $0x50] sm:$0xff]
    %v183 = vld [vmem:[#allocation8 + $0x58] sm:$0xff]
    %v184 = vld [vmem:[#allocation8 + $0x60] sm:$0xff]
    %v185 = vld [vmem:[#allocation8 + $0x68] sm:$0xff]
    %v186 = vld [vmem:[#allocation8 + $0x70] sm:$0xff]
    %v187 = vld [vmem:[#allocation8 + $0x78] sm:$0xff]
    %188 = vmatprep.subr.mxu0 0.0
    %189 = vmatpush1.msra.mxu0 %v187
    %190 = vmatprep.subr.mxu0 0.0
    %191 = vmatpush1.msra.mxu0 %v186
    %192 = vmatprep.subr.mxu0 0.0
    %193 = vmatpush1.msra.mxu0 %v185
    %194 = vmatprep.subr.mxu0 0.0
    %195 = vmatpush1.msra.mxu0 %v184
    %196 = vmatprep.subr.mxu0 0.0
    %197 = vmatpush1.msra.mxu0 %v183
    %198 = vmatprep.subr.mxu0 0.0
    %199 = vmatpush1.msra.mxu0 %v182
    %200 = vmatprep.subr.mxu0 0.0
    %201 = vmatpush1.msra.mxu0 %v181
    %202 = vmatprep.subr.mxu0 0.0
    %203 = vmatpush1.msra.mxu0 %v180
    %204 = vmatprep.subr.mxu0 0.0
    %205 = vmatpush1.msra.mxu0 %v179
    %206 = vmatprep.subr.mxu0 0.0
    %207 = vmatpush1.msra.mxu0 %v178
    %208 = vmatprep.subr.mxu0 0.0
    %209 = vmatpush1.msra.mxu0 %v177
    %210 = vmatprep.subr.mxu0 0.0
    %211 = vmatpush1.msra.mxu0 %v176
    %212 = vmatprep.subr.mxu0 0.0
    %213 = vmatpush1.msra.mxu0 %v175
    %214 = vmatprep.subr.mxu0 0.0
    %215 = vmatpush1.msra.mxu0 %v174
    %216 = vmatprep.subr.mxu0 0.0
    %217 = vmatpush1.msra.mxu0 %v173
    %218 = vmatprep.subr.mxu0 0.0
    %219 = vmatpush1.msra.mxu0 %v172
    %220 = vmatprep.subr.mxu0 0.0
    %221 = vmatpush2.msra.mxu0 0.0
    %222 = vmatprep.subr.mxu0 0.0
    %223 = vmatpush2.msra.mxu0 0.0
    %224 = vmatprep.subr.mxu0 0.0
    %225 = vmatpush2.msra.mxu0 0.0
    %226 = vmatprep.subr.mxu0 0.0
    %227 = vmatpush2.msra.mxu0 0.0
    %228 = vmatprep.subr.mxu0 0.0
    %229 = vmatpush2.msra.mxu0 0.0
    %230 = vmatprep.subr.mxu0 0.0
    %231 = vmatpush2.msra.mxu0 0.0
    %232 = vmatprep.subr.mxu0 0.0
    %233 = vmatpush2.msra.mxu0 0.0
    %234 = vmatprep.subr.mxu0 0.0
    %235 = vmatpush2.msra.mxu0 0.0
    %236 = vmatprep.subr.mxu0 0.0
    %237 = vmatpush2.msra.mxu0 0.0
    %238 = vmatprep.subr.mxu0 0.0
    %239 = vmatpush2.msra.mxu0 0.0
    %240 = vmatprep.subr.mxu0 0.0
    %241 = vmatpush2.msra.mxu0 0.0
    %242 = vmatprep.subr.mxu0 0.0
    %243 = vmatpush2.msra.mxu0 0.0
    %244 = vmatprep.subr.mxu0 0.0
    %245 = vmatpush2.msra.mxu0 0.0
    %246 = vmatprep.subr.mxu0 0.0
    %247 = vmatpush2.msra.mxu0 0.0
    %248 = vmatprep.subr.mxu0 0.0
    %249 = vmatpush2.msra.mxu0 0.0
    %250 = vmatprep.subr.mxu0 0.0
    %251 = vmatpush2.msra.mxu0 0.0
    %252 = vmatprep.mubr.f32.mxu0 0.0
    %253 = vmatmul.mubr.f32.gmra.mxu0 %v170
    %v254 = vpop.f32.mrf.mxu0
    %v255 = vadd.f32 0.0, %v254
    %v256 = vpop.f32.mrf.mxu0
    %257 = vdwg.mxu0
    %v258 = vadd.f32 %v171, %v255
    %259 = vst [vmem:[#allocation2] sm:$0xff] %v258
    // Predicated region
    $region30: #{tpu_custom_call.1} parent=1 // pred_check
      %p260 = pneg %p54
    $region31: #{tpu_custom_call.1} parent=1 // pred_check_branch
      %262 = sbr.rel (%p260) target = $region33
    $region32: #{tpu_custom_call.1} parent=1 // pred_region
      %v263 = vld [vmem:[#allocation2] sm:$0xff]
      %264 = vst [vmem:[#allocation9] sm:$0xff] %v263
    $region33: #{tpu_custom_call.1} parent=1 // pred_fallthru
      _
    // Predicated region
    $region34: #{tpu_custom_call.1} parent=1 // pred_check
      _
    $region35: #{tpu_custom_call.1} parent=1 // pred_check_branch
      %266 = sbr.rel (0) target = $region37
    $region36: #{tpu_custom_call.1} parent=1 // pred_region
      %s268 = ssub.s32 128, 128
      %269 = vsyncadd [#allocation5], %s268
      %s271 = sshll.u32 [#allocation9], 4
      %s272 = int_to_ptr.vmem [resolvable:$true] %s271
      %274 = dma.vmem_to_hbm [thread:$0]  %s272, 128, %s3, [#allocation5]
    $region37: #{tpu_custom_call.1} parent=1 // pred_fallthru
      _
    // Predicated region
    $region38: #{tpu_custom_call.1} parent=1 // pred_check
      _
    $region39: #{tpu_custom_call.1} parent=1 // pred_check_branch
      %276 = sbr.rel (0) target = $region41
    $region40: #{tpu_custom_call.1} parent=1 // pred_region
      %277 = dma.done [#allocation5], 128
    $region41: #{tpu_custom_call.1} parent=1 // pred_fallthru
      _
    %278 = vsyncpa [#allocation4], 1
    %279 = vsyncpa [#allocation7], 1
    %280 = vsyncpa [#allocation5], 1

</llo_original>
